<compile_context>
chip_gen: v6e
topology: v6e:2x2x1
jax: 0.10.0
libtpu: 0.0.40
codegen_flags: <defaults>
</compile_context>

<pallas_src>
import functools

import jax
import jax.numpy as jnp
from jax import lax
from jax.experimental import pallas as pl
from jax.experimental.pallas import tpu as pltpu


def _round_up(x, m):
    return (x + m - 1) // m * m


def _pad_feature_dim(n):
    """Pad a hidden feature dim to 128; prefer 256 (full v6e/v7x MXU width)
    when that costs <= ~25% extra zero padding."""
    p128 = _round_up(n, 128)
    p256 = _round_up(n, 256)
    if p256 == p128 or p256 <= int(n * 1.25):
        return p256
    return p128


def _pad_axis(a, axis, target):
    if a.shape[axis] == target:
        return a
    pad = [(0, 0)] * a.ndim
    pad[axis] = (0, target - a.shape[axis])
    return jnp.pad(a, pad)


def _pick_batch_tile(B, batch_tile):
    """Multiple-of-16 batch tile (bf16 sublane packing).  Shrinks the tile so
    the grid has >= 2 entries when the batch allows (v7x megacore)."""
    batch_tile = max(16, _round_up(batch_tile, 16))
    if B >= 2 * batch_tile:
        return batch_tile
    half = _round_up(max(1, -(-B // 2)), 16)
    if half < B:                      # yields at least 2 tiles
        return min(half, batch_tile)
    return _round_up(B, 16)           # tiny batch: single tile


def _vmem_cap_bytes():
    """Per-core VMEM budget: ~7/8 of physical (112 MiB on v5e/v6e, 56 MiB on
    v7x); conservative 64 MiB fallback when the query is unavailable."""
    try:
        cap = int(pltpu.get_tpu_info().vmem_capacity_bytes)
    except Exception:
        return 64 << 20
    return max(32 << 20, (cap * 7) // 8)


def _mlp_lancer_kernel(n_hidden, unroll_hidden, matmul_dtype, *refs):
    """Fused MLP forward over one batch tile.

    refs (n_hidden > 0): z, y, W0z, W0y, b0, Wh_stack, bh_stack, W_out, b_out, out
    refs (n_hidden == 0): z, y, W0z, W0y, b0, W_out, b_out, out
    Weights arrive in matmul_dtype; biases / accumulation / activations are f32.
    """
    z_ref, y_ref = refs[0], refs[1]
    out_ref = refs[-1]
    if n_hidden > 0:
        w0z_ref, w0y_ref, b0_ref, wh_ref, bh_ref, wo_ref, bo_ref = refs[2:-1]
    else:
        w0z_ref, w0y_ref, b0_ref, wo_ref, bo_ref = refs[2:-1]

    # Layer 0 (fused concat): concat([z, y]) @ W0 == z @ W0[:zd] + y @ W0[zd:]
    z = z_ref[...].astype(matmul_dtype)
    y = y_ref[...].astype(matmul_dtype)
    acc = (jnp.dot(z, w0z_ref[...], preferred_element_type=jnp.float32)
           + jnp.dot(y, w0y_ref[...], preferred_element_type=jnp.float32)
           + b0_ref[...])
    h = jnp.maximum(acc, 0.0).astype(matmul_dtype)

    if n_hidden > 0:
        def body(i, h):
            a = jnp.dot(h, wh_ref[i], preferred_element_type=jnp.float32)
            a = jnp.maximum(a + bh_ref[i], 0.0)          # bias + ReLU in f32
            return a.astype(matmul_dtype)                # narrow next MXU operand
        h = lax.fori_loop(0, n_hidden, body, h, unroll=unroll_hidden)

    out = jnp.dot(h, wo_ref[...], preferred_element_type=jnp.float32) + bo_ref[...]
    out_ref[...] = jnp.tanh(out).astype(out_ref.dtype)


def mlp_lancer_forward(z, y, params, n_layers, *, batch_tile=512,
                       matmul_dtype=jnp.bfloat16, out_dtype=jnp.float32):
    """Fused MLPLancer forward.

    z: (B, z_dim) f32, y: (B, y_dim) f32.
    params: W0 (z_dim+y_dim, L), b0 (1, L), W1..b_{n_layers-1} (L, L)/(1, L),
            W_out (L, f_dim), b_out (1, f_dim)  -- torch weight.T convention.
    """
    B, z_dim = z.shape
    y_dim = y.shape[1]
    assert params["W0"].shape[0] == z_dim + y_dim
    L = params["W0"].shape[1]
    f_dim = params["W_out"].shape[1]
    n_hidden = n_layers - 1
    md = matmul_dtype

    L_pad = _pad_feature_dim(L)
    f_pad = _round_up(f_dim, 128)

    # One-time weight preprocessing: split W0 (fused-concat layer 0), zero-pad
    # hidden/output feature dims, stack the (L, L) hidden layers.
    w0 = params["W0"].astype(md)
    w0z = _pad_axis(w0[:z_dim], 1, L_pad)
    w0y = _pad_axis(w0[z_dim:], 1, L_pad)
    b0 = _pad_axis(params["b0"].astype(jnp.float32), 1, L_pad)
    param_list = [w0z, w0y, b0]
    if n_hidden > 0:
        wh = jnp.stack([
            _pad_axis(_pad_axis(params[f"W{i}"].astype(md), 0, L_pad), 1, L_pad)
            for i in range(1, n_layers)])
        bh = jnp.stack([
            _pad_axis(params[f"b{i}"].astype(jnp.float32), 1, L_pad)
            for i in range(1, n_layers)])
        param_list += [wh, bh]
    w_out = _pad_axis(_pad_axis(params["W_out"].astype(md), 0, L_pad), 1, f_pad)
    b_out = _pad_axis(params["b_out"].astype(jnp.float32), 1, f_pad)
    param_list += [w_out, b_out]

    # Batch tiling.
    tb = _pick_batch_tile(B, batch_tile)
    num_tiles = int(pl.cdiv(B, tb))
    z_in, y_in, rows_out = z, y, B
    if num_tiles == 1 and tb > B:
        # Tiny batch: cheap zero-pad so the single block matches the arrays.
        z_in = jnp.pad(z, ((0, tb - B), (0, 0)))
        y_in = jnp.pad(y, ((0, tb - B), (0, 0)))
        rows_out = tb
    # num_tiles > 1: a partial last tile is handled by the pipeline's masked
    # boundary blocks -- no wrapper-side pad pass over the activations.

    # Resident params: constant block index + single-buffered.
    def const_spec(a):
        idx = lambda i, _nd=a.ndim: (0,) * _nd
        try:
            return pl.BlockSpec(a.shape, idx, pipeline_mode=pl.Buffered(1))
        except TypeError:  # older BlockSpec without pipeline_mode kwarg
            return pl.BlockSpec(a.shape, idx)

    in_specs = [pl.BlockSpec((tb, z_dim), lambda i: (i, 0)),
                pl.BlockSpec((tb, y_dim), lambda i: (i, 0))]
    in_specs += [const_spec(a) for a in param_list]
    out_spec = pl.BlockSpec((tb, f_pad), lambda i: (i, 0))

    # VMEM budget: single-buffered params + double-buffered z/y/out tiles +
    # f32 activation headroom.
    param_bytes = sum(int(a.size) * a.dtype.itemsize for a in param_list)
    stream_bytes = 2 * tb * (z_dim + y_dim) * z.dtype.itemsize
    out_bytes = 2 * tb * f_pad * jnp.dtype(out_dtype).itemsize
    act_bytes = 6 * tb * max(L_pad, f_pad) * 4
    vmem_needed = param_bytes + stream_bytes + out_bytes + act_bytes + (4 << 20)
    vmem_limit = int(min(_vmem_cap_bytes(), max(vmem_needed, 32 << 20)))
    # TODO(synk): if param_bytes approaches the per-core cap (very large
    # layer_size * n_layers on v7x), tile the hidden weights over an extra
    # "arbitrary" grid axis instead of keeping them fully VMEM-resident.

    rows = num_tiles * tb
    flops = 2 * rows * ((z_dim + y_dim) * L_pad
                        + n_hidden * L_pad * L_pad + L_pad * f_pad)
    bytes_accessed = (rows * (z_dim + y_dim) * z.dtype.itemsize + param_bytes
                      + rows * f_pad * jnp.dtype(out_dtype).itemsize)
    cost = pl.CostEstimate(flops=int(flops), transcendentals=int(rows * f_pad),
                           bytes_accessed=int(bytes_accessed))

    kernel = functools.partial(_mlp_lancer_kernel, n_hidden, n_hidden <= 4, md)
    out = pl.pallas_call(
        kernel,
        out_shape=jax.ShapeDtypeStruct((rows_out, f_pad), out_dtype),
        grid=(num_tiles,),
        in_specs=in_specs,
        out_specs=out_spec,
        compiler_params=pltpu.CompilerParams(
            dimension_semantics=("parallel",),   # batch tiles are independent
            vmem_limit_bytes=vmem_limit,
        ),
        cost_estimate=cost,
    )(z_in, y_in, *param_list)
    return out[:B, :f_dim]


def init_params(key, z_dim, y_dim, f_dim, n_layers, layer_size):
    """PyTorch-style uniform(-1/sqrt(fan_in), 1/sqrt(fan_in)) init; fused W0."""
    params = {}
    in_size = z_dim + y_dim

    def uniform(k, shape, fan_in):
        bound = 1.0 / jnp.sqrt(jnp.float32(fan_in))
        return jax.random.uniform(k, shape, jnp.float32, -bound, bound)

    keys = jax.random.split(key, 2 * (n_layers + 1))
    ki = 0
    fan_in = in_size
    for i in range(n_layers):
        params[f"W{i}"] = uniform(keys[ki], (fan_in, layer_size), fan_in); ki += 1
        params[f"b{i}"] = uniform(keys[ki], (1, layer_size), fan_in); ki += 1
        fan_in = layer_size
    params["W_out"] = uniform(keys[ki], (layer_size, f_dim), layer_size); ki += 1
    params["b_out"] = uniform(keys[ki], (1, f_dim), layer_size); ki += 1
    return params


def reference_forward(z, y, params, n_layers, matmul_dtype=jnp.float32):
    """Pure-JAX reference.  matmul_dtype=bf16 mirrors the kernel's MXU operands."""
    h = jnp.concatenate([z, y], axis=1)
    for i in range(n_layers):
        w = params[f"W{i}"].astype(matmul_dtype)
        b = params[f"b{i}"]
        h = jnp.maximum(
            jnp.dot(h.astype(matmul_dtype), w, preferred_element_type=jnp.float32) + b,
            0.0)
    out = jnp.dot(h.astype(matmul_dtype), params["W_out"].astype(matmul_dtype),
                  preferred_element_type=jnp.float32) + params["b_out"]
    return jnp.tanh(out)


if __name__ == "__main__":
    z_dim, y_dim, f_dim = 16, 16, 4
    key = jax.random.PRNGKey(0)
    kp, kz, ky, kz2, ky2, kp3, kz3, ky3 = jax.random.split(key, 8)

    # --- config A: n_layers=2, layer_size=32 ---------------------------------
    n_layers, layer_size = 2, 32
    params = init_params(kp, z_dim, y_dim, f_dim, n_layers, layer_size)

    # test 1: tiny batch (single padded tile)
    B = 8
    z = jax.random.normal(kz, (B, z_dim), jnp.float32)
    y = jax.random.normal(ky, (B, y_dim), jnp.float32)
    out = jax.block_until_ready(mlp_lancer_forward(z, y, params, n_layers))
    assert out.shape == (B, f_dim)
    ref_bf16 = reference_forward(z, y, params, n_layers, jnp.bfloat16)
    ref_f32 = reference_forward(z, y, params, n_layers, jnp.float32)
    assert jnp.allclose(out, ref_bf16, atol=5e-3, rtol=5e-3), "mismatch vs bf16 ref"
    assert jnp.allclose(out, ref_f32, atol=3e-2, rtol=3e-2), "mismatch vs f32 ref"

    # test 2: multi-tile grid with an uneven (masked) last tile
    B2 = 100
    z2 = jax.random.normal(kz2, (B2, z_dim), jnp.float32)
    y2 = jax.random.normal(ky2, (B2, y_dim), jnp.float32)
    out2 = jax.block_until_ready(mlp_lancer_forward(z2, y2, params, n_layers))
    assert out2.shape == (B2, f_dim)
    ref2 = reference_forward(z2, y2, params, n_layers, jnp.bfloat16)
    assert jnp.allclose(out2, ref2, atol=5e-3, rtol=5e-3), "mismatch (multi-tile)"

    # --- config B: deeper MLP -> stacked hidden weights + rolled fori_loop ---
    n_layers3, layer_size3 = 6, 64
    params3 = init_params(kp3, z_dim, y_dim, f_dim, n_layers3, layer_size3)
    B3 = 36
    z3 = jax.random.normal(kz3, (B3, z_dim), jnp.float32)
    y3 = jax.random.normal(ky3, (B3, y_dim), jnp.float32)
    out3 = jax.block_until_ready(mlp_lancer_forward(z3, y3, params3, n_layers3))
    assert out3.shape == (B3, f_dim)
    ref3 = reference_forward(z3, y3, params3, n_layers3, jnp.bfloat16)
    assert jnp.allclose(out3, ref3, atol=1e-2, rtol=1e-2), "mismatch (deep MLP)"

    # TODO(synk): training path (MSELoss / Adam / SGD update) is host-side
    # optimizer logic, not kernelized.
    print("KERNEL_OK")
</pallas_src>

<mosaic_0001>
module attributes {stable_mosaic.version = 11 : i64} {
  func.func @_mlp_lancer_kernel(%arg0: i32, %arg1: memref<16x16xf32, #tpu.memory_space<vmem>>, %arg2: memref<16x16xf32, #tpu.memory_space<vmem>>, %arg3: memref<16x128xbf16, #tpu.memory_space<vmem>>, %arg4: memref<16x128xbf16, #tpu.memory_space<vmem>>, %arg5: memref<1x128xf32, #tpu.memory_space<vmem>>, %arg6: memref<1x128x128xbf16, #tpu.memory_space<vmem>>, %arg7: memref<1x1x128xf32, #tpu.memory_space<vmem>>, %arg8: memref<128x128xbf16, #tpu.memory_space<vmem>>, %arg9: memref<1x128xf32, #tpu.memory_space<vmem>>, %arg10: memref<16x128xf32, #tpu.memory_space<vmem>>) attributes {dimension_semantics = [#tpu.dimension_semantics<parallel>], iteration_bounds = array<i64: 1>, scalar_prefetch = 0 : i64, scratch_operands = 0 : i64, tpu.core_type = #tpu.core_type<tc>, window_params = [{transform_indices = @transform_0, window_bounds = array<i64: 16, 16>}, {transform_indices = @transform_1, window_bounds = array<i64: 16, 16>}, {pipeline_mode = #tpu.pipeline_mode<synchronous>, transform_indices = @transform_2, window_bounds = array<i64: 16, 128>}, {pipeline_mode = #tpu.pipeline_mode<synchronous>, transform_indices = @transform_3, window_bounds = array<i64: 16, 128>}, {pipeline_mode = #tpu.pipeline_mode<synchronous>, transform_indices = @transform_4, window_bounds = array<i64: 1, 128>}, {pipeline_mode = #tpu.pipeline_mode<synchronous>, transform_indices = @transform_5, window_bounds = array<i64: 1, 128, 128>}, {pipeline_mode = #tpu.pipeline_mode<synchronous>, transform_indices = @transform_6, window_bounds = array<i64: 1, 1, 128>}, {pipeline_mode = #tpu.pipeline_mode<synchronous>, transform_indices = @transform_7, window_bounds = array<i64: 128, 128>}, {pipeline_mode = #tpu.pipeline_mode<synchronous>, transform_indices = @transform_8, window_bounds = array<i64: 1, 128>}, {transform_indices = @transform_9, window_bounds = array<i64: 16, 128>}]} {
    %c0 = arith.constant 0 : index
    %c0_0 = arith.constant 0 : index
    %0 = vector.load %arg1[%c0, %c0_0] : memref<16x16xf32, #tpu.memory_space<vmem>>, vector<16x16xf32>
    %1 = arith.truncf %0 : vector<16x16xf32> to vector<16x16xbf16>
    %c0_1 = arith.constant 0 : index
    %c0_2 = arith.constant 0 : index
    %2 = vector.load %arg2[%c0_1, %c0_2] : memref<16x16xf32, #tpu.memory_space<vmem>>, vector<16x16xf32>
    %3 = arith.truncf %2 : vector<16x16xf32> to vector<16x16xbf16>
    %c0_3 = arith.constant 0 : index
    %c0_4 = arith.constant 0 : index
    %4 = vector.load %arg3[%c0_3, %c0_4] : memref<16x128xbf16, #tpu.memory_space<vmem>>, vector<16x128xbf16>
    %cst = arith.constant dense<0.000000e+00> : vector<16x128xf32>
    %5 = tpu.matmul %1, %4, %cst {dimension_numbers = #tpu.dot_dimension_numbers<[1], [0], [0], [1], [0, 0, 1, 1], [], []>} : vector<16x16xbf16>, vector<16x128xbf16>, vector<16x128xf32> -> vector<16x128xf32>
    %c0_5 = arith.constant 0 : index
    %c0_6 = arith.constant 0 : index
    %6 = vector.load %arg4[%c0_5, %c0_6] : memref<16x128xbf16, #tpu.memory_space<vmem>>, vector<16x128xbf16>
    %cst_7 = arith.constant dense<0.000000e+00> : vector<16x128xf32>
    %7 = tpu.matmul %3, %6, %cst_7 {dimension_numbers = #tpu.dot_dimension_numbers<[1], [0], [0], [1], [0, 0, 1, 1], [], []>} : vector<16x16xbf16>, vector<16x128xbf16>, vector<16x128xf32> -> vector<16x128xf32>
    %8 = arith.addf %5, %7 : vector<16x128xf32>
    %c0_8 = arith.constant 0 : index
    %c0_9 = arith.constant 0 : index
    %9 = vector.load %arg5[%c0_8, %c0_9] : memref<1x128xf32, #tpu.memory_space<vmem>>, vector<1x128xf32>
    %10 = vector.broadcast %9 : vector<1x128xf32> to vector<16x128xf32>
    %11 = arith.addf %8, %10 : vector<16x128xf32>
    %cst_10 = arith.constant 0.000000e+00 : f32
    %12 = vector.broadcast %cst_10 : f32 to vector<16x128xf32>
    %13 = arith.maximumf %11, %12 : vector<16x128xf32>
    %14 = arith.truncf %13 : vector<16x128xf32> to vector<16x128xbf16>
    %c0_i32 = arith.constant 0 : i32
    %15 = arith.index_cast %c0_i32 : i32 to index
    %c0_11 = arith.constant 0 : index
    %c0_12 = arith.constant 0 : index
    %16 = vector.load %arg6[%15, %c0_11, %c0_12] : memref<1x128x128xbf16, #tpu.memory_space<vmem>>, vector<1x128x128xbf16>
    %17 = vector.shape_cast %16 : vector<1x128x128xbf16> to vector<128x128xbf16>
    %cst_13 = arith.constant dense<0.000000e+00> : vector<16x128xf32>
    %18 = tpu.matmul %14, %17, %cst_13 {dimension_numbers = #tpu.dot_dimension_numbers<[1], [0], [0], [1], [0, 0, 1, 1], [], []>} : vector<16x128xbf16>, vector<128x128xbf16>, vector<16x128xf32> -> vector<16x128xf32>
    %19 = arith.index_cast %c0_i32 : i32 to index
    %c0_14 = arith.constant 0 : index
    %c0_15 = arith.constant 0 : index
    %20 = vector.load %arg7[%19, %c0_14, %c0_15] : memref<1x1x128xf32, #tpu.memory_space<vmem>>, vector<1x1x128xf32>
    %21 = vector.shape_cast %20 : vector<1x1x128xf32> to vector<1x128xf32>
    %22 = vector.broadcast %21 : vector<1x128xf32> to vector<16x128xf32>
    %23 = arith.addf %18, %22 : vector<16x128xf32>
    %cst_16 = arith.constant 0.000000e+00 : f32
    %24 = vector.broadcast %cst_16 : f32 to vector<16x128xf32>
    %25 = arith.maximumf %23, %24 : vector<16x128xf32>
    %26 = arith.truncf %25 : vector<16x128xf32> to vector<16x128xbf16>
    %c1_i32 = arith.constant 1 : i32
    %c0_17 = arith.constant 0 : index
    %c0_18 = arith.constant 0 : index
    %27 = vector.load %arg8[%c0_17, %c0_18] : memref<128x128xbf16, #tpu.memory_space<vmem>>, vector<128x128xbf16>
    %cst_19 = arith.constant dense<0.000000e+00> : vector<16x128xf32>
    %28 = tpu.matmul %26, %27, %cst_19 {dimension_numbers = #tpu.dot_dimension_numbers<[1], [0], [0], [1], [0, 0, 1, 1], [], []>} : vector<16x128xbf16>, vector<128x128xbf16>, vector<16x128xf32> -> vector<16x128xf32>
    %c0_20 = arith.constant 0 : index
    %c0_21 = arith.constant 0 : index
    %29 = vector.load %arg9[%c0_20, %c0_21] : memref<1x128xf32, #tpu.memory_space<vmem>>, vector<1x128xf32>
    %30 = vector.broadcast %29 : vector<1x128xf32> to vector<16x128xf32>
    %31 = arith.addf %28, %30 : vector<16x128xf32>
    %32 = math.tanh %31 : vector<16x128xf32>
    %c0_22 = arith.constant 0 : index
    %c0_23 = arith.constant 0 : index
    %33 = vector.load %arg10[%c0_22, %c0_23] : memref<16x128xf32, #tpu.memory_space<vmem>>, vector<16x128xf32>
    tpu.vector_store %arg10[%c0_22, %c0_23], %32 {strides = array<i32>} : memref<16x128xf32, #tpu.memory_space<vmem>>, vector<16x128xf32>,
    return
  }
  func.func @transform_0(%arg0: i32) -> (i32, i32) {
    %c0_i32 = arith.constant 0 : i32
    %c0_i32_0 = arith.constant 0 : i32
    return %arg0, %c0_i32 : i32, i32
  }
  func.func @transform_1(%arg0: i32) -> (i32, i32) {
    %c0_i32 = arith.constant 0 : i32
    %c0_i32_0 = arith.constant 0 : i32
    return %arg0, %c0_i32 : i32, i32
  }
  func.func @transform_2(%arg0: i32) -> (i32, i32) {
    %c0_i32 = arith.constant 0 : i32
    %c0_i32_0 = arith.constant 0 : i32
    %c0_i32_1 = arith.constant 0 : i32
    return %c0_i32, %c0_i32_0 : i32, i32
  }
  func.func @transform_3(%arg0: i32) -> (i32, i32) {
    %c0_i32 = arith.constant 0 : i32
    %c0_i32_0 = arith.constant 0 : i32
    %c0_i32_1 = arith.constant 0 : i32
    return %c0_i32, %c0_i32_0 : i32, i32
  }
  func.func @transform_4(%arg0: i32) -> (i32, i32) {
    %c0_i32 = arith.constant 0 : i32
    %c0_i32_0 = arith.constant 0 : i32
    %c0_i32_1 = arith.constant 0 : i32
    return %c0_i32, %c0_i32_0 : i32, i32
  }
  func.func @transform_5(%arg0: i32) -> (i32, i32, i32) {
    %c0_i32 = arith.constant 0 : i32
    %c0_i32_0 = arith.constant 0 : i32
    %c0_i32_1 = arith.constant 0 : i32
    %c0_i32_2 = arith.constant 0 : i32
    return %c0_i32, %c0_i32_0, %c0_i32_1 : i32, i32, i32
  }
  func.func @transform_6(%arg0: i32) -> (i32, i32, i32) {
    %c0_i32 = arith.constant 0 : i32
    %c0_i32_0 = arith.constant 0 : i32
    %c0_i32_1 = arith.constant 0 : i32
    %c0_i32_2 = arith.constant 0 : i32
    return %c0_i32, %c0_i32_0, %c0_i32_1 : i32, i32, i32
  }
  func.func @transform_7(%arg0: i32) -> (i32, i32) {
    %c0_i32 = arith.constant 0 : i32
    %c0_i32_0 = arith.constant 0 : i32
    %c0_i32_1 = arith.constant 0 : i32
    return %c0_i32, %c0_i32_0 : i32, i32
  }
  func.func @transform_8(%arg0: i32) -> (i32, i32) {
    %c0_i32 = arith.constant 0 : i32
    %c0_i32_0 = arith.constant 0 : i32
    %c0_i32_1 = arith.constant 0 : i32
    return %c0_i32, %c0_i32_0 : i32, i32
  }
  func.func @transform_9(%arg0: i32) -> (i32, i32) {
    %c0_i32 = arith.constant 0 : i32
    %c0_i32_0 = arith.constant 0 : i32
    return %arg0, %c0_i32 : i32, i32
  }
}

</mosaic_0001>

<llo_original>
// kernel: tpu_custom_call.1
$region0: #{tpu_custom_call.1}
  #allocation0 [shape = 'u32[]', space=smem, size = 0x4, offset = 0x4, fixed_abs, tag = 'smem constant byte address 0x4 - core index']
  #allocation1 [shape = 'u32[144,128]{1,0:T(1,128)}', space=vmem, size = 0x12000, scoped, tag = 'internal scratch']
  %s0 = inlined_call_operand.hbm [shape: f32[16,16], index: 0, kind: input, shape index: {}]
  %s1 = inlined_call_operand.hbm [shape: f32[16,16], index: 1, kind: input, shape index: {}]
  %s2 = inlined_call_operand.hbm [shape: bf16[16,128], index: 2, kind: input, shape index: {}]
  %s3 = inlined_call_operand.hbm [shape: bf16[16,128], index: 3, kind: input, shape index: {}]
  %s4 = inlined_call_operand.vmem [shape: f32[1,128], index: 4, kind: input, shape index: {}]
  %s5 = inlined_call_operand.hbm [shape: bf16[1,128,128], index: 5, kind: input, shape index: {}]
  %s6 = inlined_call_operand.vmem [shape: f32[1,1,128], index: 6, kind: input, shape index: {}]
  %s7 = inlined_call_operand.hbm [shape: bf16[128,128], index: 7, kind: input, shape index: {}]
  %s8 = inlined_call_operand.vmem [shape: f32[1,128], index: 8, kind: input, shape index: {}]
  %s9 = inlined_call_operand.hbm [shape: f32[16,128], index: 9, kind: output, shape index: {}]
  %s10 = sld [smem:[#allocation0]]
  $region70: #{tpu_custom_call.1} parent=0
    _
  %s12 = ssub.s32 1, %s10
  %s13 = scalar_select 0, %s12, %s10
  $region1: #{tpu_custom_call.1} parent=0
    #allocation2 [shape = 'u8[8192]{0}', space=vmem, size = 0x2000, scoped, tag = 'input window, operand 0, single buffered']
    #allocation3 [shape = 's32[1]{0}', space=sflag, size = 0x4, scoped, tag = 'scoped memory for tpu_custom_call.1']
    #allocation4 [shape = 's32[1]{0}', space=sflag, size = 0x4, scoped, tag = 'scoped memory for tpu_custom_call.1']
    #allocation5 [shape = 'u8[8192]{0}', space=vmem, size = 0x2000, scoped, tag = 'input window, operand 1, single buffered']
    #allocation6 [shape = 's32[1]{0}', space=sflag, size = 0x4, scoped, tag = 'scoped memory for tpu_custom_call.1']
    #allocation7 [shape = 'u8[4096]{0}', space=vmem, size = 0x1000, scoped, tag = 'input window, operand 2, single buffered']
    #allocation8 [shape = 'u8[4096]{0}', space=vmem, size = 0x1000, scoped, tag = 'input window, operand 3, single buffered']
    #allocation9 [shape = 's32[1]{0}', space=sflag, size = 0x4, scoped, tag = 'scoped memory for tpu_custom_call.1']
    #allocation10 [shape = 'u8[32768]{0}', space=vmem, size = 0x8000, scoped, tag = 'input window, operand 5, single buffered']
    #allocation11 [shape = 'u8[32768]{0}', space=vmem, size = 0x8000, scoped, tag = 'input window, operand 7, single buffered']
    #allocation12 [shape = 's32[1]{0}', space=sflag, size = 0x4, scoped, tag = 'scoped memory for tpu_custom_call.1']
    #allocation13 [shape = 'u8[8192]{0}', space=vmem, size = 0x2000, scoped, tag = 'output window, operand 0, single buffered']
    %14 = vsyncpa [#allocation3], 0
    %15 = vsyncpa [#allocation6], 0
    %16 = vsyncpa [#allocation9], 0
    %17 = vsyncpa [#allocation12], 0
    %18 = vsyncpa [#allocation4], 0
    // Predicated region
    $region2: #{tpu_custom_call.1} parent=1 // pred_check
      _
    $region3: #{tpu_custom_call.1} parent=1 // pred_check_branch
      %20 = sbr.rel (0) target = $region5
    $region4: #{tpu_custom_call.1} parent=1 // pred_region
      %s22 = ssub.s32 256, 256
      %23 = vsyncadd [#allocation3], %s22
      %s24 = sshll.u32 [#allocation2], 4
      %s25 = int_to_ptr.vmem [resolvable:$true] %s24
      %30 = dma.hbm_to_vmem [thread:$0]  %s0, 256, %s25, [#allocation3], 128, 128, 8
    $region5: #{tpu_custom_call.1} parent=1 // pred_fallthru
      _
    // Predicated region
    $region6: #{tpu_custom_call.1} parent=1 // pred_check
      _
    $region7: #{tpu_custom_call.1} parent=1 // pred_check_branch
      %32 = sbr.rel (0) target = $region9
    $region8: #{tpu_custom_call.1} parent=1 // pred_region
      %s34 = ssub.s32 256, 256
      %35 = vsyncadd [#allocation6], %s34
      %s36 = sshll.u32 [#allocation5], 4
      %s37 = int_to_ptr.vmem [resolvable:$true] %s36
      %42 = dma.hbm_to_vmem [thread:$0]  %s1, 256, %s37, [#allocation6], 128, 128, 8
    $region9: #{tpu_custom_call.1} parent=1 // pred_fallthru
      _
    // Predicated region
    $region10: #{tpu_custom_call.1} parent=1 // pred_check
      _
    $region11: #{tpu_custom_call.1} parent=1 // pred_check_branch
      %44 = sbr.rel (0) target = $region13
    $region12: #{tpu_custom_call.1} parent=1 // pred_region
      %s46 = ssub.s32 128, 128
      %47 = vsyncadd [#allocation6], %s46
      %s48 = sshll.u32 [#allocation7], 4
      %s49 = int_to_ptr.vmem [resolvable:$true] %s48
      %54 = dma.hbm_to_vmem [thread:$0]  %s2, 128, %s49, [#allocation6], 64, 64, 4
    $region13: #{tpu_custom_call.1} parent=1 // pred_fallthru
      _
    // Predicated region
    $region14: #{tpu_custom_call.1} parent=1 // pred_check
      _
    $region15: #{tpu_custom_call.1} parent=1 // pred_check_branch
      %56 = sbr.rel (0) target = $region17
    $region16: #{tpu_custom_call.1} parent=1 // pred_region
      %s58 = ssub.s32 128, 128
      %59 = vsyncadd [#allocation9], %s58
      %s60 = sshll.u32 [#allocation8], 4
      %s61 = int_to_ptr.vmem [resolvable:$true] %s60
      %66 = dma.hbm_to_vmem [thread:$0]  %s3, 128, %s61, [#allocation9], 64, 64, 4
    $region17: #{tpu_custom_call.1} parent=1 // pred_fallthru
      _
    // Predicated region
    $region18: #{tpu_custom_call.1} parent=1 // pred_check
      _
    $region19: #{tpu_custom_call.1} parent=1 // pred_check_branch
      %68 = sbr.rel (0) target = $region21
    $region20: #{tpu_custom_call.1} parent=1 // pred_region
      _
    $region21: #{tpu_custom_call.1} parent=1 // pred_fallthru
      _
    // Predicated region
    $region22: #{tpu_custom_call.1} parent=1 // pred_check
      _
    $region23: #{tpu_custom_call.1} parent=1 // pred_check_branch
      %70 = sbr.rel (0) target = $region25
    $region24: #{tpu_custom_call.1} parent=1 // pred_region
      %s72 = ssub.s32 1024, 1024
      %73 = vsyncadd [#allocation9], %s72
      %s74 = sshll.u32 [#allocation10], 4
      %s75 = int_to_ptr.vmem [resolvable:$true] %s74
      %80 = dma.hbm_to_vmem [thread:$0]  %s5, 1024, %s75, [#allocation9], 64, 64, 4
    $region25: #{tpu_custom_call.1} parent=1 // pred_fallthru
      _
    // Predicated region
    $region26: #{tpu_custom_call.1} parent=1 // pred_check
      _
    $region27: #{tpu_custom_call.1} parent=1 // pred_check_branch
      %82 = sbr.rel (0) target = $region29
    $region28: #{tpu_custom_call.1} parent=1 // pred_region
      _
    $region29: #{tpu_custom_call.1} parent=1 // pred_fallthru
      _
    // Predicated region
    $region30: #{tpu_custom_call.1} parent=1 // pred_check
      _
    $region31: #{tpu_custom_call.1} parent=1 // pred_check_branch
      %84 = sbr.rel (0) target = $region33
    $region32: #{tpu_custom_call.1} parent=1 // pred_region
      %s86 = ssub.s32 1024, 1024
      %87 = vsyncadd [#allocation12], %s86
      %s88 = sshll.u32 [#allocation11], 4
      %s89 = int_to_ptr.vmem [resolvable:$true] %s88
      %94 = dma.hbm_to_vmem [thread:$0]  %s7, 1024, %s89, [#allocation12], 64, 64, 4
    $region33: #{tpu_custom_call.1} parent=1 // pred_fallthru
      _
    // Predicated region
    $region34: #{tpu_custom_call.1} parent=1 // pred_check
      _
    $region35: #{tpu_custom_call.1} parent=1 // pred_check_branch
      %96 = sbr.rel (0) target = $region37
    $region36: #{tpu_custom_call.1} parent=1 // pred_region
      _
    $region37: #{tpu_custom_call.1} parent=1 // pred_fallthru
      _
    // Predicated region
    $region38: #{tpu_custom_call.1} parent=1 // pred_check
      _
    $region39: #{tpu_custom_call.1} parent=1 // pred_check_branch
      %98 = sbr.rel (0) target = $region41
    $region40: #{tpu_custom_call.1} parent=1 // pred_region
      %99 = dma.done [#allocation3], 256
    $region41: #{tpu_custom_call.1} parent=1 // pred_fallthru
      _
    // Predicated region
    $region42: #{tpu_custom_call.1} parent=1 // pred_check
      _
    $region43: #{tpu_custom_call.1} parent=1 // pred_check_branch
      %101 = sbr.rel (0) target = $region45
    $region44: #{tpu_custom_call.1} parent=1 // pred_region
      %102 = dma.done [#allocation6], 256
    $region45: #{tpu_custom_call.1} parent=1 // pred_fallthru
      _
    // Predicated region
    $region46: #{tpu_custom_call.1} parent=1 // pred_check
      _
    $region47: #{tpu_custom_call.1} parent=1 // pred_check_branch
      %104 = sbr.rel (0) target = $region49
    $region48: #{tpu_custom_call.1} parent=1 // pred_region
      %105 = dma.done [#allocation6], 128
    $region49: #{tpu_custom_call.1} parent=1 // pred_fallthru
      _
    // Predicated region
    $region50: #{tpu_custom_call.1} parent=1 // pred_check
      _
    $region51: #{tpu_custom_call.1} parent=1 // pred_check_branch
      %107 = sbr.rel (0) target = $region53
    $region52: #{tpu_custom_call.1} parent=1 // pred_region
      %108 = dma.done [#allocation9], 128
    $region53: #{tpu_custom_call.1} parent=1 // pred_fallthru
      _
    // Predicated region
    $region54: #{tpu_custom_call.1} parent=1 // pred_check
      _
    $region55: #{tpu_custom_call.1} parent=1 // pred_check_branch
      %110 = sbr.rel (0) target = $region57
    $region56: #{tpu_custom_call.1} parent=1 // pred_region
      %111 = dma.done [#allocation9], 1024
    $region57: #{tpu_custom_call.1} parent=1 // pred_fallthru
      _
    // Predicated region
    $region58: #{tpu_custom_call.1} parent=1 // pred_check
      _
    $region59: #{tpu_custom_call.1} parent=1 // pred_check_branch
      %113 = sbr.rel (0) target = $region61
    $region60: #{tpu_custom_call.1} parent=1 // pred_region
      %114 = dma.done [#allocation12], 1024
    $region61: #{tpu_custom_call.1} parent=1 // pred_fallthru
      _
    %v116 = vld [vmem:[#allocation2] sm:$0xff]
    %v117 = vld [vmem:[#allocation2 + $0x8] sm:$0xff]
    %v118 = vpack.c.bf16 %v117, %v116
    %v119 = vld [vmem:[#allocation5] sm:$0xff]
    %v120 = vld [vmem:[#allocation5 + $0x8] sm:$0xff]
    %v121 = vpack.c.bf16 %v120, %v119
    %v122 = vld [vmem:[#allocation7] sm:$0xf]
    %v123 = vld [vmem:[#allocation7 + $0x4] sm:$0xf]
    %v124 = vld [vmem:[#allocation8] sm:$0xf]
    %v125 = vld [vmem:[#allocation8 + $0x4] sm:$0xf]
    %v128 = vunpack.c.l.b16 %v124
    %v129 = vunpack.c.l.b16 %v125
    %v130 = vpack.c.b16 %v129, %v128
    %vm132 = vcmask 130048
    %v134 = vsel %vm132, %v121, 0
    %136 = vmatprep.subr.bf16.mxu0 0
    %137 = vmatpush1.bf16.msra.mxu0 0
    %138 = vmatprep.subr.bf16.mxu0 0
    %139 = vmatpush1.bf16.msra.mxu0 0
    %140 = vmatprep.subr.bf16.mxu0 0
    %141 = vmatpush1.bf16.msra.mxu0 0
    %142 = vmatprep.subr.bf16.mxu0 0
    %143 = vmatpush1.bf16.msra.mxu0 0
    %144 = vmatprep.subr.bf16.mxu0 0
    %145 = vmatpush1.bf16.msra.mxu0 0
    %146 = vmatprep.subr.bf16.mxu0 0
    %147 = vmatpush1.bf16.msra.mxu0 0
    %148 = vmatprep.subr.bf16.mxu0 0
    %149 = vmatpush1.bf16.msra.mxu0 0
    %150 = vmatprep.subr.bf16.mxu0 0
    %151 = vmatpush1.bf16.msra.mxu0 %v130
    %152 = vmatprep.subr.bf16.mxu0 0
    %153 = vmatpush2.bf16.msra.mxu0 0
    %154 = vmatprep.subr.bf16.mxu0 0
    %155 = vmatpush2.bf16.msra.mxu0 0
    %156 = vmatprep.subr.bf16.mxu0 0
    %157 = vmatpush2.bf16.msra.mxu0 0
    %158 = vmatprep.subr.bf16.mxu0 0
    %159 = vmatpush2.bf16.msra.mxu0 0
    %160 = vmatprep.subr.bf16.mxu0 0
    %161 = vmatpush2.bf16.msra.mxu0 0
    %162 = vmatprep.subr.bf16.mxu0 0
    %163 = vmatpush2.bf16.msra.mxu0 0
    %164 = vmatprep.subr.bf16.mxu0 0
    %165 = vmatpush2.bf16.msra.mxu0 0
    %166 = vmatprep.subr.bf16.mxu0 0
    %167 = vmatpush2.bf16.msra.mxu0 0
    %168 = vmatprep.mubr.bf16.mxu0 0
    %169 = vmatmul.mubr.bf16.gmra.mxu0 %v134
    %v170 = vpop.f32.mrf.mxu0
    %v171 = vadd.f32 0.0, %v170
    %v172 = vpop.f32.mrf.mxu0
    %v173 = vpop.f32.mrf.mxu0
    %v174 = vadd.f32 0.0, %v173
    %v175 = vpop.f32.mrf.mxu0
    %176 = vdwg.mxu0
    %v179 = vunpack.c.l.b16 %v122
    %v180 = vunpack.c.l.b16 %v123
    %v181 = vpack.c.b16 %v180, %v179
    %v184 = vsel %vm132, %v118, 0
    %186 = vmatprep.subr.bf16.mxu0 0
    %187 = vmatpush1.bf16.msra.mxu0 0
    %188 = vmatprep.subr.bf16.mxu0 0
    %189 = vmatpush1.bf16.msra.mxu0 0
    %190 = vmatprep.subr.bf16.mxu0 0
    %191 = vmatpush1.bf16.msra.mxu0 0
    %192 = vmatprep.subr.bf16.mxu0 0
    %193 = vmatpush1.bf16.msra.mxu0 0
    %194 = vmatprep.subr.bf16.mxu0 0
    %195 = vmatpush1.bf16.msra.mxu0 0
    %196 = vmatprep.subr.bf16.mxu0 0
    %197 = vmatpush1.bf16.msra.mxu0 0
    %198 = vmatprep.subr.bf16.mxu0 0
    %199 = vmatpush1.bf16.msra.mxu0 0
    %200 = vmatprep.subr.bf16.mxu0 0
    %201 = vmatpush1.bf16.msra.mxu0 %v181
    %202 = vmatprep.subr.bf16.mxu0 0
    %203 = vmatpush2.bf16.msra.mxu0 0
    %204 = vmatprep.subr.bf16.mxu0 0
    %205 = vmatpush2.bf16.msra.mxu0 0
    %206 = vmatprep.subr.bf16.mxu0 0
    %207 = vmatpush2.bf16.msra.mxu0 0
    %208 = vmatprep.subr.bf16.mxu0 0
    %209 = vmatpush2.bf16.msra.mxu0 0
    %210 = vmatprep.subr.bf16.mxu0 0
    %211 = vmatpush2.bf16.msra.mxu0 0
    %212 = vmatprep.subr.bf16.mxu0 0
    %213 = vmatpush2.bf16.msra.mxu0 0
    %214 = vmatprep.subr.bf16.mxu0 0
    %215 = vmatpush2.bf16.msra.mxu0 0
    %216 = vmatprep.subr.bf16.mxu0 0
    %217 = vmatpush2.bf16.msra.mxu0 0
    %218 = vmatprep.mubr.bf16.mxu0 0
    %219 = vmatmul.mubr.bf16.gmra.mxu0 %v184
    %v220 = vpop.f32.mrf.mxu0
    %v221 = vadd.f32 %v171, %v220
    %v222 = vpop.f32.mrf.mxu0
    %v223 = vpop.f32.mrf.mxu0
    %v224 = vadd.f32 %v174, %v223
    %v225 = vpop.f32.mrf.mxu0
    %226 = vdwg.mxu0
    %v227 = vld [vmem:[%s4] sm:$0x1]
    %v229 = vlaneseq
    %v230 = vshrl.u32 %v229, 7
    %v231 = vsub.s32 0, %v230
    %v232 = vrot.slane %v227, %v231
    %v234 = vadd.f32 %v221, %v232
    %v235 = vadd.f32 %v224, %v232
    %v236 = vmax.f32 %v234, 0.0
    %v237 = vmax.f32 %v235, 0.0
    %v238 = vpack.c.bf16 %v237, %v236
    %v239 = vld [vmem:[#allocation10] sm:$0xf]
    %v240 = vld [vmem:[#allocation10 + $0x4] sm:$0xf]
    %v241 = vld [vmem:[#allocation10 + $0x8] sm:$0xf]
    %v242 = vld [vmem:[#allocation10 + $0xc] sm:$0xf]
    %v243 = vld [vmem:[#allocation10 + $0x10] sm:$0xf]
    %v244 = vld [vmem:[#allocation10 + $0x14] sm:$0xf]
    %v245 = vld [vmem:[#allocation10 + $0x18] sm:$0xf]
    %v246 = vld [vmem:[#allocation10 + $0x1c] sm:$0xf]
    %v247 = vld [vmem:[#allocation10 + $0x20] sm:$0xf]
    %v248 = vld [vmem:[#allocation10 + $0x24] sm:$0xf]
    %v249 = vld [vmem:[#allocation10 + $0x28] sm:$0xf]
    %v250 = vld [vmem:[#allocation10 + $0x2c] sm:$0xf]
    %v251 = vld [vmem:[#allocation10 + $0x30] sm:$0xf]
    %v252 = vld [vmem:[#allocation10 + $0x34] sm:$0xf]
    %v253 = vld [vmem:[#allocation10 + $0x38] sm:$0xf]
    %v254 = vld [vmem:[#allocation10 + $0x3c] sm:$0xf]
    %v255 = vld [vmem:[%s6] sm:$0x1]
    %v257 = vlaneseq
    %v258 = vshrl.u32 %v257, 7
    %v259 = vsub.s32 0, %v258
    %v260 = vrot.slane %v255, %v259
    %v278 = vunpack.c.l.b16 %v239
    %v279 = vunpack.c.l.b16 %v240
    %v280 = vunpack.c.l.b16 %v241
    %v281 = vunpack.c.l.b16 %v242
    %v282 = vunpack.c.l.b16 %v243
    %v283 = vunpack.c.l.b16 %v244
    %v284 = vunpack.c.l.b16 %v245
    %v285 = vunpack.c.l.b16 %v246
    %v286 = vunpack.c.l.b16 %v247
    %v287 = vunpack.c.l.b16 %v248
    %v288 = vunpack.c.l.b16 %v249
    %v289 = vunpack.c.l.b16 %v250
    %v290 = vunpack.c.l.b16 %v251
    %v291 = vunpack.c.l.b16 %v252
    %v292 = vunpack.c.l.b16 %v253
    %v293 = vunpack.c.l.b16 %v254
    %v294 = vpack.c.b16 %v279, %v278
    %v295 = vpack.c.b16 %v281, %v280
    %v296 = vpack.c.b16 %v283, %v282
    %v297 = vpack.c.b16 %v285, %v284
    %v298 = vpack.c.b16 %v287, %v286
    %v299 = vpack.c.b16 %v289, %v288
    %v300 = vpack.c.b16 %v291, %v290
    %v301 = vpack.c.b16 %v293, %v292
    %310 = vmatprep.subr.bf16.mxu0 0
    %311 = vmatpush1.bf16.msra.mxu0 %v301
    %312 = vmatprep.subr.bf16.mxu0 0
    %313 = vmatpush1.bf16.msra.mxu0 %v300
    %314 = vmatprep.subr.bf16.mxu0 0
    %315 = vmatpush1.bf16.msra.mxu0 %v299
    %316 = vmatprep.subr.bf16.mxu0 0
    %317 = vmatpush1.bf16.msra.mxu0 %v298
    %318 = vmatprep.subr.bf16.mxu0 0
    %319 = vmatpush1.bf16.msra.mxu0 %v297
    %320 = vmatprep.subr.bf16.mxu0 0
    %321 = vmatpush1.bf16.msra.mxu0 %v296
    %322 = vmatprep.subr.bf16.mxu0 0
    %323 = vmatpush1.bf16.msra.mxu0 %v295
    %324 = vmatprep.subr.bf16.mxu0 0
    %325 = vmatpush1.bf16.msra.mxu0 %v294
    %326 = vmatprep.subr.bf16.mxu0 0
    %327 = vmatpush2.bf16.msra.mxu0 0
    %328 = vmatprep.subr.bf16.mxu0 0
    %329 = vmatpush2.bf16.msra.mxu0 0
    %330 = vmatprep.subr.bf16.mxu0 0
    %331 = vmatpush2.bf16.msra.mxu0 0
    %332 = vmatprep.subr.bf16.mxu0 0
    %333 = vmatpush2.bf16.msra.mxu0 0
    %334 = vmatprep.subr.bf16.mxu0 0
    %335 = vmatpush2.bf16.msra.mxu0 0
    %336 = vmatprep.subr.bf16.mxu0 0
    %337 = vmatpush2.bf16.msra.mxu0 0
    %338 = vmatprep.subr.bf16.mxu0 0
    %339 = vmatpush2.bf16.msra.mxu0 0
    %340 = vmatprep.subr.bf16.mxu0 0
    %341 = vmatpush2.bf16.msra.mxu0 0
    %342 = vmatprep.mubr.bf16.mxu0 0
    %343 = vmatmul.mubr.bf16.gmra.mxu0 %v238
    %v344 = vpop.f32.mrf.mxu0
    %v345 = vadd.f32 %v260, %v344
    %v346 = vpop.f32.mrf.mxu0
    %v347 = vpop.f32.mrf.mxu0
    %v348 = vadd.f32 %v260, %v347
    %v349 = vpop.f32.mrf.mxu0
    %350 = vdwg.mxu0
    %v351 = vmax.f32 %v345, 0.0
    %v352 = vmax.f32 %v348, 0.0
    %v353 = vpack.c.bf16 %v352, %v351
    %v354 = vld [vmem:[#allocation11] sm:$0xf]
    %v355 = vld [vmem:[#allocation11 + $0x4] sm:$0xf]
    %v356 = vld [vmem:[#allocation11 + $0x8] sm:$0xf]
    %v357 = vld [vmem:[#allocation11 + $0xc] sm:$0xf]
    %v358 = vld [vmem:[#allocation11 + $0x10] sm:$0xf]
    %v359 = vld [vmem:[#allocation11 + $0x14] sm:$0xf]
    %v360 = vld [vmem:[#allocation11 + $0x18] sm:$0xf]
    %v361 = vld [vmem:[#allocation11 + $0x1c] sm:$0xf]
    %v362 = vld [vmem:[#allocation11 + $0x20] sm:$0xf]
    %v363 = vld [vmem:[#allocation11 + $0x24] sm:$0xf]
    %v364 = vld [vmem:[#allocation11 + $0x28] sm:$0xf]
    %v365 = vld [vmem:[#allocation11 + $0x2c] sm:$0xf]
    %v366 = vld [vmem:[#allocation11 + $0x30] sm:$0xf]
    %v367 = vld [vmem:[#allocation11 + $0x34] sm:$0xf]
    %v368 = vld [vmem:[#allocation11 + $0x38] sm:$0xf]
    %v369 = vld [vmem:[#allocation11 + $0x3c] sm:$0xf]
    %v370 = vld [vmem:[%s8] sm:$0x1]
    %v372 = vlaneseq
    %v373 = vshrl.u32 %v372, 7
    %v374 = vsub.s32 0, %v373
    %v375 = vrot.slane %v370, %v374
    %v393 = vunpack.c.l.b16 %v354
    %v394 = vunpack.c.l.b16 %v355
    %v395 = vunpack.c.l.b16 %v356
    %v396 = vunpack.c.l.b16 %v357
    %v397 = vunpack.c.l.b16 %v358
    %v398 = vunpack.c.l.b16 %v359
    %v399 = vunpack.c.l.b16 %v360
    %v400 = vunpack.c.l.b16 %v361
    %v401 = vunpack.c.l.b16 %v362
    %v402 = vunpack.c.l.b16 %v363
    %v403 = vunpack.c.l.b16 %v364
    %v404 = vunpack.c.l.b16 %v365
    %v405 = vunpack.c.l.b16 %v366
    %v406 = vunpack.c.l.b16 %v367
    %v407 = vunpack.c.l.b16 %v368
    %v408 = vunpack.c.l.b16 %v369
    %v409 = vpack.c.b16 %v394, %v393
    %v410 = vpack.c.b16 %v396, %v395
    %v411 = vpack.c.b16 %v398, %v397
    %v412 = vpack.c.b16 %v400, %v399
    %v413 = vpack.c.b16 %v402, %v401
    %v414 = vpack.c.b16 %v404, %v403
    %v415 = vpack.c.b16 %v406, %v405
    %v416 = vpack.c.b16 %v408, %v407
    %425 = vmatprep.subr.bf16.mxu0 0
    %426 = vmatpush1.bf16.msra.mxu0 %v416
    %427 = vmatprep.subr.bf16.mxu0 0
    %428 = vmatpush1.bf16.msra.mxu0 %v415
    %429 = vmatprep.subr.bf16.mxu0 0
    %430 = vmatpush1.bf16.msra.mxu0 %v414
    %431 = vmatprep.subr.bf16.mxu0 0
    %432 = vmatpush1.bf16.msra.mxu0 %v413
    %433 = vmatprep.subr.bf16.mxu0 0
    %434 = vmatpush1.bf16.msra.mxu0 %v412
    %435 = vmatprep.subr.bf16.mxu0 0
    %436 = vmatpush1.bf16.msra.mxu0 %v411
    %437 = vmatprep.subr.bf16.mxu0 0
    %438 = vmatpush1.bf16.msra.mxu0 %v410
    %439 = vmatprep.subr.bf16.mxu0 0
    %440 = vmatpush1.bf16.msra.mxu0 %v409
    %441 = vmatprep.subr.bf16.mxu0 0
    %442 = vmatpush2.bf16.msra.mxu0 0
    %443 = vmatprep.subr.bf16.mxu0 0
    %444 = vmatpush2.bf16.msra.mxu0 0
    %445 = vmatprep.subr.bf16.mxu0 0
    %446 = vmatpush2.bf16.msra.mxu0 0
    %447 = vmatprep.subr.bf16.mxu0 0
    %448 = vmatpush2.bf16.msra.mxu0 0
    %449 = vmatprep.subr.bf16.mxu0 0
    %450 = vmatpush2.bf16.msra.mxu0 0
    %451 = vmatprep.subr.bf16.mxu0 0
    %452 = vmatpush2.bf16.msra.mxu0 0
    %453 = vmatprep.subr.bf16.mxu0 0
    %454 = vmatpush2.bf16.msra.mxu0 0
    %455 = vmatprep.subr.bf16.mxu0 0
    %456 = vmatpush2.bf16.msra.mxu0 0
    %457 = vmatprep.mubr.bf16.mxu0 0
    %458 = vmatmul.mubr.bf16.gmra.mxu0 %v353
    %v459 = vpop.f32.mrf.mxu0
    %v460 = vadd.f32 %v375, %v459
    %v461 = vpop.f32.mrf.mxu0
    %v462 = vpop.f32.mrf.mxu0
    %v463 = vadd.f32 %v375, %v462
    %v464 = vpop.f32.mrf.mxu0
    %465 = vdwg.mxu0
    %v466 = vtanh.pop %v460
    %v467 = vtanh.pop %v463
    %468 = vst [vmem:[#allocation13] sm:$0xff] %v466
    %469 = vst [vmem:[#allocation13 + $0x8] sm:$0xff] %v467
    // Predicated region
    $region62: #{tpu_custom_call.1} parent=1 // pred_check
      _
    $region63: #{tpu_custom_call.1} parent=1 // pred_check_branch
      %471 = sbr.rel (0) target = $region65
    $region64: #{tpu_custom_call.1} parent=1 // pred_region
      %s473 = ssub.s32 256, 256
      %474 = vsyncadd [#allocation4], %s473
      %s475 = sshll.u32 [#allocation13], 4
      %s476 = int_to_ptr.vmem [resolvable:$true] %s475
      %481 = dma.vmem_to_hbm [thread:$0]  %s476, 256, %s9, [#allocation4], 128, 128, 8
    $region65: #{tpu_custom_call.1} parent=1 // pred_fallthru
      _
    // Predicated region
    $region66: #{tpu_custom_call.1} parent=1 // pred_check
      _
    $region67: #{tpu_custom_call.1} parent=1 // pred_check_branch
      %483 = sbr.rel (0) target = $region69
    $region68: #{tpu_custom_call.1} parent=1 // pred_region
      %484 = dma.done [#allocation4], 256
    $region69: #{tpu_custom_call.1} parent=1 // pred_fallthru
      _
    %485 = vsyncpa [#allocation3], 1
    %486 = vsyncpa [#allocation6], 1
    %487 = vsyncpa [#allocation9], 1
    %488 = vsyncpa [#allocation12], 1
    %489 = vsyncpa [#allocation4], 1

</llo_original>
